<compile_context>
chip_gen: v6e
topology: v6e:2x2x1
jax: 0.10.0
libtpu: 0.0.40
codegen_flags: <defaults>
</compile_context>

<pallas_src>
import jax
import jax.numpy as jnp
from jax.experimental import pallas as pl
from jax.experimental.pallas import tpu as pltpu


def _round_up(x, m):
    return ((x + m - 1) // m) * m


def linear_projection(x, w, b, cls_token, pos_embedding, *,
                      tile_rows=1024, compute_dtype=None):
    """x: (B, N, P); w: (P, D); b: (D,); cls_token: (1, D); pos: (1, N+1, D)."""
    B, N, P = x.shape
    D = w.shape[1]
    out_dtype = x.dtype
    if compute_dtype is None:
        compute_dtype = x.dtype
    compute_dtype = jnp.dtype(compute_dtype)

    S = N + 1
    Sp = _round_up(S, 8)      # sublane-aligned padded sequence (incl. cls slot)
    Pp = _round_up(P, 128)    # lane/K-aligned patch dim (fills MXU K depth)
    Dp = _round_up(D, 128)    # lane-dense output dim (unmasked vst)

    # Batch tile: ~tile_rows GEMM rows per grid step; keep >=2 grid steps so the
    # single "parallel" axis can shard across v7x's 2 TensorCores.
    TB = max(1, min(B, tile_rows // max(Sp, 1)))
    if B >= 2:
        TB = min(TB, (B + 1) // 2)
    Bp = _round_up(B, TB)
    grid_steps = Bp // TB
    # TODO(synk): also tile the sequence axis for extreme seq lengths where one
    # (TB, Sp, Dp) tile would not fit the per-TC VMEM budget.

    # ---- wrapper-side packing (one fused XLA pass per tensor) ---------------
    # Zero row at the cls slot so every output row is "x_row @ W + add_row".
    x_aug = jnp.zeros((Bp, Sp, Pp), compute_dtype)
    x_aug = x_aug.at[:B, 1:S, :P].set(x.astype(compute_dtype))

    # Unique (NOT batch-broadcast) f32 additive table, fetched once by the kernel:
    #   row 0 = cls + pos[0];  rows 1..N = bias + pos[1:];  padded rows = 0.
    add = jnp.zeros((Sp, Dp), jnp.float32)
    add = add.at[0, :D].set(cls_token[0].astype(jnp.float32)
                            + pos_embedding[0, 0].astype(jnp.float32))
    add = add.at[1:S, :D].set(b[None, :].astype(jnp.float32)
                              + pos_embedding[0, 1:].astype(jnp.float32))

    w_p = jnp.zeros((Pp, Dp), compute_dtype).at[:P, :D].set(w.astype(compute_dtype))

    prec = (jax.lax.Precision.HIGHEST if compute_dtype == jnp.float32
            else jax.lax.Precision.DEFAULT)

    def kernel(x_ref, w_ref, a_ref, o_ref):
        # x_ref: (TB, Sp, Pp); w_ref: (Pp, Dp); a_ref: (Sp, Dp) f32; o_ref: (TB, Sp, Dp)
        tb, sp, pp = x_ref.shape
        dp = w_ref.shape[1]
        x2 = x_ref[...].reshape(tb * sp, pp)          # free merge: Sp % 8 == 0
        acc = jnp.dot(x2, w_ref[...],
                      preferred_element_type=jnp.float32, precision=prec)  # MXU, f32 acc
        acc = acc.reshape(tb, sp, dp) + a_ref[...][None, :, :]             # f32 add
        o_ref[...] = acc.astype(o_ref.dtype)          # lane-dense full-tile store

    cbytes = compute_dtype.itemsize
    obytes = jnp.dtype(out_dtype).itemsize
    flops = 2 * Bp * Sp * Pp * Dp
    bytes_accessed = (Bp * Sp * Pp * cbytes      # x (streamed)
                      + Pp * Dp * cbytes         # weight (fetched once)
                      + Sp * Dp * 4              # add table (fetched once)
                      + Bp * Sp * Dp * obytes)   # output
    vmem_needed = (2 * TB * Sp * Pp * cbytes     # double-buffered x tiles
                   + 2 * TB * Sp * Dp * obytes   # double-buffered out tiles
                   + Pp * Dp * cbytes            # single-buffered resident weight
                   + Sp * Dp * 4)                # single-buffered resident add table
    try:
        phys = int(getattr(pltpu.get_tpu_info(), "vmem_capacity_bytes", 64 << 20))
    except Exception:
        phys = 64 << 20                          # assume v7x per-TC (most restrictive)
    vmem_cap = min(phys * 3 // 4, 100 << 20)     # ~48 MiB on v7x, ~96 MiB on v5e/v6e
    vmem_limit = max(vmem_needed + (8 << 20), 32 << 20)
    vmem_limit = min(vmem_limit, vmem_cap)
    vmem_limit = max(vmem_limit, vmem_needed)    # never clamp below the working set

    out = pl.pallas_call(
        kernel,
        out_shape=jax.ShapeDtypeStruct((Bp, Sp, Dp), out_dtype),
        grid_spec=pltpu.PrefetchScalarGridSpec(
            num_scalar_prefetch=0,
            grid=(grid_steps,),
            in_specs=[
                pl.BlockSpec((TB, Sp, Pp), lambda i: (i, 0, 0)),      # x (streamed)
                pl.BlockSpec((Pp, Dp), lambda i: (0, 0),
                             pipeline_mode=pl.Buffered(1)),           # resident weight
                pl.BlockSpec((Sp, Dp), lambda i: (0, 0),
                             pipeline_mode=pl.Buffered(1)),           # resident add table
            ],
            out_specs=pl.BlockSpec((TB, Sp, Dp), lambda i: (i, 0, 0)),
        ),
        compiler_params=pltpu.CompilerParams(
            dimension_semantics=("parallel",),
            vmem_limit_bytes=int(vmem_limit),
        ),
        cost_estimate=pl.CostEstimate(flops=int(flops), transcendentals=0,
                                      bytes_accessed=int(bytes_accessed)),
    )(x_aug, w_p, add)

    return out[:B, :S, :D]


def reference(x, w, b, cls_token, pos_embedding):
    B = x.shape[0]
    proj = jnp.einsum("bnp,pd->bnd", x, w, precision="highest") + b
    cls = jnp.broadcast_to(cls_token[None, :, :], (B, 1, w.shape[1]))
    return jnp.concatenate([cls, proj], axis=1) + pos_embedding


if __name__ == "__main__":
    # Small, deterministic config consistent with the module's __init__.
    batch = 2
    num_patches = 8
    patch_vec_size = 16
    latent_vec_dim = 32
    drop_rate = 0.1  # inference-mode dropout -> identity

    key = jax.random.PRNGKey(0)
    kx, kw, kb, kc, kp = jax.random.split(key, 5)

    x = jax.random.normal(kx, (batch, num_patches, patch_vec_size), jnp.float32)
    # nn.Linear(patch_vec_size, latent_vec_dim): weight (D, P), bias (D,)
    w_t = (jax.random.normal(kw, (latent_vec_dim, patch_vec_size), jnp.float32)
           * (1.0 / jnp.sqrt(float(patch_vec_size))))
    w = w_t.T                                            # (P, D) for the kernel
    b = jax.random.normal(kb, (latent_vec_dim,), jnp.float32) * 0.01
    cls_token = jax.random.normal(kc, (1, latent_vec_dim), jnp.float32)
    pos_embedding = jax.random.normal(
        kp, (1, num_patches + 1, latent_vec_dim), jnp.float32)

    ref = reference(x, w, b, cls_token, pos_embedding)

    # f32 compute path: tight check against the pure-JAX reference.
    out = jax.block_until_ready(
        linear_projection(x, w, b, cls_token, pos_embedding))
    assert out.shape == (batch, num_patches + 1, latent_vec_dim), out.shape
    assert jnp.allclose(out, ref, atol=1e-4, rtol=1e-4), "f32 mismatch vs reference"

    # bf16 MXU-feeding path (v6e/v7x fast path; inference-grade precision).
    out_bf16 = jax.block_until_ready(
        linear_projection(x, w, b, cls_token, pos_embedding,
                          compute_dtype=jnp.bfloat16))
    assert jnp.allclose(out_bf16, ref, atol=5e-2, rtol=5e-2), "bf16 mismatch vs reference"

    print("KERNEL_OK")
</pallas_src>

<mosaic_0001>
module attributes {stable_mosaic.version = 11 : i64} {
  func.func @kernel(%arg0: i32, %arg1: memref<1x16x128xf32, #tpu.memory_space<vmem>>, %arg2: memref<128x128xf32, #tpu.memory_space<vmem>>, %arg3: memref<16x128xf32, #tpu.memory_space<vmem>>, %arg4: memref<1x16x128xf32, #tpu.memory_space<vmem>>) attributes {dimension_semantics = [#tpu.dimension_semantics<parallel>], iteration_bounds = array<i64: 2>, scalar_prefetch = 0 : i64, scratch_operands = 0 : i64, tpu.core_type = #tpu.core_type<tc>, window_params = [{transform_indices = @transform_0, window_bounds = array<i64: 1, 16, 128>}, {pipeline_mode = #tpu.pipeline_mode<synchronous>, transform_indices = @transform_1, window_bounds = array<i64: 128, 128>}, {pipeline_mode = #tpu.pipeline_mode<synchronous>, transform_indices = @transform_2, window_bounds = array<i64: 16, 128>}, {transform_indices = @transform_3, window_bounds = array<i64: 1, 16, 128>}]} {
    %c0 = arith.constant 0 : index
    %c0_0 = arith.constant 0 : index
    %c0_1 = arith.constant 0 : index
    %0 = vector.load %arg1[%c0, %c0_0, %c0_1] : memref<1x16x128xf32, #tpu.memory_space<vmem>>, vector<1x16x128xf32>
    %1 = vector.shape_cast %0 : vector<1x16x128xf32> to vector<16x128xf32>
    %c0_2 = arith.constant 0 : index
    %c0_3 = arith.constant 0 : index
    %2 = vector.load %arg2[%c0_2, %c0_3] : memref<128x128xf32, #tpu.memory_space<vmem>>, vector<128x128xf32>
    %cst = arith.constant dense<0.000000e+00> : vector<16x128xf32>
    %3 = tpu.matmul %1, %2, %cst {dimension_numbers = #tpu.dot_dimension_numbers<[1], [0], [0], [1], [0, 0, 1, 1], [], []>, precision = #tpu.contract_precision<fp32>} : vector<16x128xf32>, vector<128x128xf32>, vector<16x128xf32> -> vector<16x128xf32>
    %4 = vector.shape_cast %3 : vector<16x128xf32> to vector<1x16x128xf32>
    %c0_4 = arith.constant 0 : index
    %c0_5 = arith.constant 0 : index
    %5 = vector.load %arg3[%c0_4, %c0_5] : memref<16x128xf32, #tpu.memory_space<vmem>>, vector<16x128xf32>
    %6 = vector.shape_cast %5 : vector<16x128xf32> to vector<1x16x128xf32>
    %7 = arith.addf %4, %6 : vector<1x16x128xf32>
    %c0_6 = arith.constant 0 : index
    %c0_7 = arith.constant 0 : index
    %c0_8 = arith.constant 0 : index
    %8 = vector.load %arg4[%c0_6, %c0_7, %c0_8] : memref<1x16x128xf32, #tpu.memory_space<vmem>>, vector<1x16x128xf32>
    tpu.vector_store %arg4[%c0_6, %c0_7, %c0_8], %7 {strides = array<i32>} : memref<1x16x128xf32, #tpu.memory_space<vmem>>, vector<1x16x128xf32>,
    return
  }
  func.func @transform_0(%arg0: i32) -> (i32, i32, i32) {
    %c0_i32 = arith.constant 0 : i32
    %c0_i32_0 = arith.constant 0 : i32
    %c0_i32_1 = arith.constant 0 : i32
    return %arg0, %c0_i32, %c0_i32_0 : i32, i32, i32
  }
  func.func @transform_1(%arg0: i32) -> (i32, i32) {
    %c0_i32 = arith.constant 0 : i32
    %c0_i32_0 = arith.constant 0 : i32
    %c0_i32_1 = arith.constant 0 : i32
    return %c0_i32, %c0_i32_0 : i32, i32
  }
  func.func @transform_2(%arg0: i32) -> (i32, i32) {
    %c0_i32 = arith.constant 0 : i32
    %c0_i32_0 = arith.constant 0 : i32
    %c0_i32_1 = arith.constant 0 : i32
    return %c0_i32, %c0_i32_0 : i32, i32
  }
  func.func @transform_3(%arg0: i32) -> (i32, i32, i32) {
    %c0_i32 = arith.constant 0 : i32
    %c0_i32_0 = arith.constant 0 : i32
    %c0_i32_1 = arith.constant 0 : i32
    return %arg0, %c0_i32, %c0_i32_0 : i32, i32, i32
  }
}

</mosaic_0001>

<llo_original>
// kernel: tpu_custom_call.1
$region0: #{tpu_custom_call.1}
  #allocation0 [shape = 'u32[]', space=smem, size = 0x4, offset = 0x4, fixed_abs, tag = 'smem constant byte address 0x4 - core index']
  #allocation1 [shape = 'u32[144,128]{1,0:T(1,128)}', space=vmem, size = 0x12000, scoped, tag = 'internal scratch']
  %s0 = inlined_call_operand.hbm [shape: f32[2,16,128], index: 0, kind: input, shape index: {}]
  %s1 = inlined_call_operand.hbm [shape: f32[128,128], index: 1, kind: input, shape index: {}]
  %s2 = inlined_call_operand.hbm [shape: f32[16,128], index: 2, kind: input, shape index: {}]
  %s3 = inlined_call_operand.hbm [shape: f32[2,16,128], index: 3, kind: output, shape index: {}]
  %s4 = sld [smem:[#allocation0]]
  $region57: #{tpu_custom_call.1} parent=0
    _
  %s6 = ssub.s32 1, %s4
  %s7 = scalar_select 0, %s6, %s4
  $region1: #{tpu_custom_call.1} parent=0
    #allocation2 [shape = 'u8[16384]{0}', space=vmem, size = 0x4000, scoped, tag = 'input window, operand 0']
    #allocation3 [shape = 's32[2]{0}', space=sflag, size = 0x8, scoped, tag = 'scoped memory for tpu_custom_call.1']
    #allocation4 [shape = 's32[2]{0}', space=sflag, size = 0x8, scoped, tag = 'scoped memory for tpu_custom_call.1']
    #allocation5 [shape = 'u8[65536]{0}', space=vmem, size = 0x10000, scoped, tag = 'input window, operand 1, single buffered']
    #allocation6 [shape = 's32[1]{0}', space=sflag, size = 0x4, scoped, tag = 'scoped memory for tpu_custom_call.1']
    #allocation7 [shape = 'u8[8192]{0}', space=vmem, size = 0x2000, scoped, tag = 'input window, operand 2, single buffered']
    #allocation8 [shape = 'u8[16384]{0}', space=vmem, size = 0x4000, scoped, tag = 'output window, operand 0']
    %8 = vsyncpa [#allocation3], 0
    %s9 = scalar_lea.sflag [#allocation3], 1
    %10 = vsyncpa %s9, 0
    %11 = vsyncpa [#allocation6], 0
    %12 = vsyncpa [#allocation4], 0
    %s13 = scalar_lea.sflag [#allocation4], 1
    %14 = vsyncpa %s13, 0
    loop: start=0, step=1, limit=4
    $region2: #{tpu_custom_call.1} parent=1 // loop_pre_header
      _
    $region3: #{tpu_custom_call.1} parent=1 // loop_header
      %s16 = sphi 0, %s20
      %p17 = scmp.ge.s32.totalorder %s16, 4
      %s26 = sphi 0, %s28
      %s29 = sphi 0, %s26
      %s30 = sphi 0, %s29
      %s46 = sphi 0, %s30
      %s50 = sphi 0, %s50
      %s52 = sphi 0, %s50
      %s53 = sphi 0, %s52
      %s67 = sphi 0, %s53
      %s71 = sphi 0, %s71
      %s73 = sphi 0, %s71
      %s74 = sphi 0, %s73
      %s88 = sphi 0, %s74
      %s94 = sphi 0, %s96
      %s97 = sphi 0, %s94
      %s98 = sphi 0, %s97
      %s114 = sphi 0, %s98
    $region4: #{tpu_custom_call.1} parent=1 // loop_header_branch
      %19 = sbr.rel (%p17) target = $region8
    $region5: #{tpu_custom_call.1} parent=1 // loop_body
      %s21 = ssub.s32 %s16, 1
      %s22 = ssub.s32 %s16, 2
      %s23 = sadd.s32 %s16, 1
      %s24 = ssub.s32 %s16, %s23
      %p25 = scmp.eq.s32.totalorder %s24, 0
      %s27 = sadd.s32 %s26, 1
      %s28 = scalar_select %p25, %s26, %s27
      %p31 = pneg %p25
      %p32 = scmp.eq.s32.totalorder %s16, 1
      %p33 = por %p31, %p32
      %p34 = scmp.ne.s32.totalorder %s26, %s29
      %p35 = scmp.eq.s32.totalorder %s16, 0
      %p36 = por %p34, %p35
      %p37 = scmp.ne.s32.totalorder %s26, %s29
      %p38 = scmp.eq.s32.totalorder %s21, 1
      %p39 = por %p37, %p38
      %p40 = scmp.ne.s32.totalorder %s29, %s30
      %p41 = scmp.eq.s32.totalorder %s21, 0
      %p42 = por %p40, %p41
      %p43 = scmp.ne.s32.totalorder %s29, %s30
      %p44 = scmp.eq.s32.totalorder %s22, 1
      %p45 = por %p43, %p44
      %p47 = scmp.ne.s32.totalorder %s30, %s46
      %p48 = scmp.eq.s32.totalorder %s22, 0
      %p49 = por %p47, %p48
      %s51 = sadd.s32 %s50, 1
      %p54 = scmp.eq.s32.totalorder %s16, 1
      %p55 = scmp.ne.s32.totalorder %s50, %s52
      %p56 = scmp.eq.s32.totalorder %s16, 0
      %p57 = por %p55, %p56
      %p58 = scmp.ne.s32.totalorder %s50, %s52
      %p59 = scmp.eq.s32.totalorder %s21, 1
      %p60 = por %p58, %p59
      %p61 = scmp.ne.s32.totalorder %s52, %s53
      %p62 = scmp.eq.s32.totalorder %s21, 0
      %p63 = por %p61, %p62
      %p64 = scmp.ne.s32.totalorder %s52, %s53
      %p65 = scmp.eq.s32.totalorder %s22, 1
      %p66 = por %p64, %p65
      %p68 = scmp.ne.s32.totalorder %s53, %s67
      %p69 = scmp.eq.s32.totalorder %s22, 0
      %p70 = por %p68, %p69
      %s72 = sadd.s32 %s71, 1
      %p75 = scmp.eq.s32.totalorder %s16, 1
      %p76 = scmp.ne.s32.totalorder %s71, %s73
      %p77 = scmp.eq.s32.totalorder %s16, 0
      %p78 = por %p76, %p77
      %p79 = scmp.ne.s32.totalorder %s71, %s73
      %p80 = scmp.eq.s32.totalorder %s21, 1
      %p81 = por %p79, %p80
      %p82 = scmp.ne.s32.totalorder %s73, %s74
      %p83 = scmp.eq.s32.totalorder %s21, 0
      %p84 = por %p82, %p83
      %p85 = scmp.ne.s32.totalorder %s73, %s74
      %p86 = scmp.eq.s32.totalorder %s22, 1
      %p87 = por %p85, %p86
      %p89 = scmp.ne.s32.totalorder %s74, %s88
      %p90 = scmp.eq.s32.totalorder %s22, 0
      %p91 = por %p89, %p90
      %s92 = ssub.s32 %s16, %s23
      %p93 = scmp.eq.s32.totalorder %s92, 0
      %s95 = sadd.s32 %s94, 1
      %s96 = scalar_select %p93, %s94, %s95
      %p99 = pneg %p93
      %p100 = scmp.eq.s32.totalorder %s16, 1
      %p101 = por %p99, %p100
      %p102 = scmp.ne.s32.totalorder %s94, %s97
      %p103 = scmp.eq.s32.totalorder %s16, 0
      %p104 = por %p102, %p103
      %p105 = scmp.ne.s32.totalorder %s94, %s97
      %p106 = scmp.eq.s32.totalorder %s21, 1
      %p107 = por %p105, %p106
      %p108 = scmp.ne.s32.totalorder %s97, %s98
      %p109 = scmp.eq.s32.totalorder %s21, 0
      %p110 = por %p108, %p109
      %p111 = scmp.ne.s32.totalorder %s97, %s98
      %p112 = scmp.eq.s32.totalorder %s22, 1
      %p113 = por %p111, %p112
      %p115 = scmp.ne.s32.totalorder %s98, %s114
      %p116 = scmp.eq.s32.totalorder %s22, 0
      %p117 = por %p115, %p116
      %p118 = scmp.le.s32.totalorder 1, %s16
      %p119 = scmp.lt.s32.totalorder %s16, 3
      %p120 = pnand %p118, %p119
      %p121 = pneg %p120
      // Predicated region
      $region9: #{tpu_custom_call.1} parent=5 // pred_check
        _
      $region10: #{tpu_custom_call.1} parent=5 // pred_check_branch
        %123 = sbr.rel (%p120) target = $region12
      $region11: #{tpu_custom_call.1} parent=5 // pred_region
        %s124 = ssub.s32 %s16, 1
        // Predicated region
        $region13: #{tpu_custom_call.1} parent=11 // pred_check
          %p125 = pneg %p63
        $region14: #{tpu_custom_call.1} parent=11 // pred_check_branch
          %127 = sbr.rel (%p125) target = $region16
        $region15: #{tpu_custom_call.1} parent=11 // pred_region
          %s129 = ssub.s32 2048, 2048
          %130 = vsyncadd [#allocation6], %s129
          %s131 = sshll.u32 [#allocation5], 4
          %s132 = int_to_ptr.vmem [resolvable:$true] %s131
          %137 = dma.hbm_to_vmem [thread:$0]  %s1, 2048, %s132, [#allocation6], 128, 128, 8
        $region16: #{tpu_custom_call.1} parent=11 // pred_fallthru
          _
        // Predicated region
        $region17: #{tpu_custom_call.1} parent=11 // pred_check
          %p138 = pneg %p84
        $region18: #{tpu_custom_call.1} parent=11 // pred_check_branch
          %140 = sbr.rel (%p138) target = $region20
        $region19: #{tpu_custom_call.1} parent=11 // pred_region
          %s142 = ssub.s32 256, 256
          %143 = vsyncadd [#allocation6], %s142
          %s144 = sshll.u32 [#allocation7], 4
          %s145 = int_to_ptr.vmem [resolvable:$true] %s144
          %150 = dma.hbm_to_vmem [thread:$0]  %s2, 256, %s145, [#allocation6], 128, 128, 8
        $region20: #{tpu_custom_call.1} parent=11 // pred_fallthru
          _
      $region12: #{tpu_custom_call.1} parent=5 // pred_fallthru
        _
      %p151 = scmp.lt.s32.totalorder %s16, 2
      // Predicated region
      $region21: #{tpu_custom_call.1} parent=5 // pred_check
        %p152 = pneg %p151
      $region22: #{tpu_custom_call.1} parent=5 // pred_check_branch
        %154 = sbr.rel (%p152) target = $region24
      $region23: #{tpu_custom_call.1} parent=5 // pred_region
        // Predicated region
        $region25: #{tpu_custom_call.1} parent=23 // pred_check
          %p155 = pneg %p36
        $region26: #{tpu_custom_call.1} parent=23 // pred_check_branch
          %157 = sbr.rel (%p155) target = $region28
        $region27: #{tpu_custom_call.1} parent=23 // pred_region
          %s158 = sand.u32 %s26, 1
          %s159 = scalar_lea.sflag [#allocation3], %s158
          %s160 = sand.u32 %s26, 1
          %s161 = smul.addr %s160, 16
          %s162 = scalar_lea.vmem [#allocation2], %s161
          %s164 = ssub.s32 256, 256
          %165 = vsyncadd %s159, %s164
          %s166 = smul.addr %s16, 2
          %s167 = smul.addr %s166, 128
          %s168 = scalar_lea.hbm %s0, %s167
          %s169 = sshll.u32 %s162, 4
          %s170 = int_to_ptr.vmem [resolvable:$true] %s169
          %175 = dma.hbm_to_vmem [thread:$0]  %s168, 256, %s170, %s159, 128, 128, 8
        $region28: #{tpu_custom_call.1} parent=23 // pred_fallthru
          _
      $region24: #{tpu_custom_call.1} parent=5 // pred_fallthru
        _
      %p176 = scmp.le.s32.totalorder 1, %s16
      %p177 = scmp.lt.s32.totalorder %s16, 3
      %p178 = pnand %p176, %p177
      %p179 = pneg %p178
      // Predicated region
      $region29: #{tpu_custom_call.1} parent=5 // pred_check
        _
      $region30: #{tpu_custom_call.1} parent=5 // pred_check_branch
        %181 = sbr.rel (%p178) target = $region32
      $region31: #{tpu_custom_call.1} parent=5 // pred_region
        %s182 = ssub.s32 %s16, 1
        %s183 = sand.u32 %s29, 1
        %s184 = scalar_lea.sflag [#allocation3], %s183
        %s185 = sand.u32 %s29, 1
        %s186 = smul.addr %s185, 16
        %s187 = scalar_lea.vmem [#allocation2], %s186
        // Predicated region
        $region33: #{tpu_custom_call.1} parent=31 // pred_check
          %p188 = pneg %p42
        $region34: #{tpu_custom_call.1} parent=31 // pred_check_branch
          %190 = sbr.rel (%p188) target = $region36
        $region35: #{tpu_custom_call.1} parent=31 // pred_region
          %191 = dma.done %s184, 256
        $region36: #{tpu_custom_call.1} parent=31 // pred_fallthru
          _
        // Predicated region
        $region37: #{tpu_custom_call.1} parent=31 // pred_check
          %p192 = pneg %p63
        $region38: #{tpu_custom_call.1} parent=31 // pred_check_branch
          %194 = sbr.rel (%p192) target = $region40
        $region39: #{tpu_custom_call.1} parent=31 // pred_region
          %195 = dma.done [#allocation6], 2048
        $region40: #{tpu_custom_call.1} parent=31 // pred_fallthru
          _
        // Predicated region
        $region41: #{tpu_custom_call.1} parent=31 // pred_check
          %p196 = pneg %p84
        $region42: #{tpu_custom_call.1} parent=31 // pred_check_branch
          %198 = sbr.rel (%p196) target = $region44
        $region43: #{tpu_custom_call.1} parent=31 // pred_region
          %199 = dma.done [#allocation6], 256
        $region44: #{tpu_custom_call.1} parent=31 // pred_fallthru
          _
        %s200 = sand.u32 %s29, 1
        %s201 = scalar_lea.sflag [#allocation3], %s200
        %s202 = sand.u32 %s29, 1
        %s203 = smul.addr %s202, 16
        %s204 = scalar_lea.vmem [#allocation2], %s203
        %p205 = pneg %p42
        %p206 = pneg %p39
        %p207 = pneg %p63
        %p208 = pneg %p60
        %p209 = pneg %p84
        %p210 = pneg %p81
        %p211 = pneg %p110
        %p212 = pneg %p107
        %s213 = sand.u32 %s97, 1
        %s214 = scalar_lea.sflag [#allocation4], %s213
        %s215 = sand.u32 %s97, 1
        %s216 = smul.addr %s215, 16
        %s217 = scalar_lea.vmem [#allocation8], %s216
        %v218 = vld [vmem:[%s187] sm:$0xff]
        %v219 = vld [vmem:[%s187 + $0x8] sm:$0xff]
        %v220 = vld [vmem:[#allocation5] sm:$0xff]
        %v221 = vld [vmem:[#allocation5 + $0x8] sm:$0xff]
        %v222 = vld [vmem:[#allocation5 + $0x10] sm:$0xff]
        %v223 = vld [vmem:[#allocation5 + $0x18] sm:$0xff]
        %v224 = vld [vmem:[#allocation5 + $0x20] sm:$0xff]
        %v225 = vld [vmem:[#allocation5 + $0x28] sm:$0xff]
        %v226 = vld [vmem:[#allocation5 + $0x30] sm:$0xff]
        %v227 = vld [vmem:[#allocation5 + $0x38] sm:$0xff]
        %v228 = vld [vmem:[#allocation5 + $0x40] sm:$0xff]
        %v229 = vld [vmem:[#allocation5 + $0x48] sm:$0xff]
        %v230 = vld [vmem:[#allocation5 + $0x50] sm:$0xff]
        %v231 = vld [vmem:[#allocation5 + $0x58] sm:$0xff]
        %v232 = vld [vmem:[#allocation5 + $0x60] sm:$0xff]
        %v233 = vld [vmem:[#allocation5 + $0x68] sm:$0xff]
        %v234 = vld [vmem:[#allocation5 + $0x70] sm:$0xff]
        %v235 = vld [vmem:[#allocation5 + $0x78] sm:$0xff]
        %236 = vmatprep.subr.mxu0 0.0
        %v237 = vand.u32 %v235, 4294901760
        %238 = vmatpush1.msra.mxu0 %v237
        %239 = vmatprep.subr.mxu0 0.0
        %v240 = vand.u32 %v234, 4294901760
        %241 = vmatpush1.msra.mxu0 %v240
        %242 = vmatprep.subr.mxu0 0.0
        %v243 = vand.u32 %v233, 4294901760
        %244 = vmatpush1.msra.mxu0 %v243
        %245 = vmatprep.subr.mxu0 0.0
        %v246 = vand.u32 %v232, 4294901760
        %247 = vmatpush1.msra.mxu0 %v246
        %248 = vmatprep.subr.mxu0 0.0
        %v249 = vand.u32 %v231, 4294901760
        %250 = vmatpush1.msra.mxu0 %v249
        %251 = vmatprep.subr.mxu0 0.0
        %v252 = vand.u32 %v230, 4294901760
        %253 = vmatpush1.msra.mxu0 %v252
        %254 = vmatprep.subr.mxu0 0.0
        %v255 = vand.u32 %v229, 4294901760
        %256 = vmatpush1.msra.mxu0 %v255
        %257 = vmatprep.subr.mxu0 0.0
        %v258 = vand.u32 %v228, 4294901760
        %259 = vmatpush1.msra.mxu0 %v258
        %260 = vmatprep.subr.mxu0 0.0
        %v261 = vand.u32 %v227, 4294901760
        %262 = vmatpush1.msra.mxu0 %v261
        %263 = vmatprep.subr.mxu0 0.0
        %v264 = vand.u32 %v226, 4294901760
        %265 = vmatpush1.msra.mxu0 %v264
        %266 = vmatprep.subr.mxu0 0.0
        %v267 = vand.u32 %v225, 4294901760
        %268 = vmatpush1.msra.mxu0 %v267
        %269 = vmatprep.subr.mxu0 0.0
        %v270 = vand.u32 %v224, 4294901760
        %271 = vmatpush1.msra.mxu0 %v270
        %272 = vmatprep.subr.mxu0 0.0
        %v273 = vand.u32 %v223, 4294901760
        %274 = vmatpush1.msra.mxu0 %v273
        %275 = vmatprep.subr.mxu0 0.0
        %v276 = vand.u32 %v222, 4294901760
        %277 = vmatpush1.msra.mxu0 %v276
        %278 = vmatprep.subr.mxu0 0.0
        %v279 = vand.u32 %v221, 4294901760
        %280 = vmatpush1.msra.mxu0 %v279
        %281 = vmatprep.subr.mxu0 0.0
        %v282 = vand.u32 %v220, 4294901760
        %283 = vmatpush1.msra.mxu0 %v282
        %284 = vmatprep.subr.mxu0 0.0
        %285 = vmatpush2.msra.mxu0 0.0
        %286 = vmatprep.subr.mxu0 0.0
        %287 = vmatpush2.msra.mxu0 0.0
        %288 = vmatprep.subr.mxu0 0.0
        %289 = vmatpush2.msra.mxu0 0.0
        %290 = vmatprep.subr.mxu0 0.0
        %291 = vmatpush2.msra.mxu0 0.0
        %292 = vmatprep.subr.mxu0 0.0
        %293 = vmatpush2.msra.mxu0 0.0
        %294 = vmatprep.subr.mxu0 0.0
        %295 = vmatpush2.msra.mxu0 0.0
        %296 = vmatprep.subr.mxu0 0.0
        %297 = vmatpush2.msra.mxu0 0.0
        %298 = vmatprep.subr.mxu0 0.0
        %299 = vmatpush2.msra.mxu0 0.0
        %300 = vmatprep.subr.mxu0 0.0
        %301 = vmatpush2.msra.mxu0 0.0
        %302 = vmatprep.subr.mxu0 0.0
        %303 = vmatpush2.msra.mxu0 0.0
        %304 = vmatprep.subr.mxu0 0.0
        %305 = vmatpush2.msra.mxu0 0.0
        %306 = vmatprep.subr.mxu0 0.0
        %307 = vmatpush2.msra.mxu0 0.0
        %308 = vmatprep.subr.mxu0 0.0
        %309 = vmatpush2.msra.mxu0 0.0
        %310 = vmatprep.subr.mxu0 0.0
        %311 = vmatpush2.msra.mxu0 0.0
        %312 = vmatprep.subr.mxu0 0.0
        %313 = vmatpush2.msra.mxu0 0.0
        %314 = vmatprep.subr.mxu0 0.0
        %315 = vmatpush2.msra.mxu0 0.0
        %316 = vmatprep.mubr.f32.mxu0 0.0
        %v317 = vand.u32 %v218, 4294901760
        %v318 = vsub.f32 %v218, %v317
        %v319 = vand.u32 %v318, 4294901760
        %v320 = vsub.f32 %v318, %v319
        %v321 = vand.u32 %v320, 4294901760
        %322 = vmatmul.mubr.f32.gmra.mxu0 %v321
        %v323 = vpop.f32.mrf.mxu0
        %v324 = vadd.f32 0.0, %v323
        %v325 = vpop.f32.mrf.mxu0
        %326 = vmatprep.mubr.f32.mxu0 0.0
        %v327 = vand.u32 %v219, 4294901760
        %v328 = vsub.f32 %v219, %v327
        %v329 = vand.u32 %v328, 4294901760
        %v330 = vsub.f32 %v328, %v329
        %v331 = vand.u32 %v330, 4294901760
        %332 = vmatmul.mubr.f32.gmra.mxu0 %v331
        %v333 = vpop.f32.mrf.mxu0
        %v334 = vadd.f32 0.0, %v333
        %v335 = vpop.f32.mrf.mxu0
        %336 = vdwg.mxu0
        %337 = vmatprep.subr.mxu0 0.0
        %v338 = vand.u32 %v235, 4294901760
        %v339 = vsub.f32 %v235, %v338
        %v340 = vand.u32 %v339, 4294901760
        %v341 = vsub.f32 %v339, %v340
        %v342 = vand.u32 %v341, 4294901760
        %343 = vmatpush1.msra.mxu0 %v342
        %344 = vmatprep.subr.mxu0 0.0
        %v345 = vand.u32 %v234, 4294901760
        %v346 = vsub.f32 %v234, %v345
        %v347 = vand.u32 %v346, 4294901760
        %v348 = vsub.f32 %v346, %v347
        %v349 = vand.u32 %v348, 4294901760
        %350 = vmatpush1.msra.mxu0 %v349
        %351 = vmatprep.subr.mxu0 0.0
        %v352 = vand.u32 %v233, 4294901760
        %v353 = vsub.f32 %v233, %v352
        %v354 = vand.u32 %v353, 4294901760
        %v355 = vsub.f32 %v353, %v354
        %v356 = vand.u32 %v355, 4294901760
        %357 = vmatpush1.msra.mxu0 %v356
        %358 = vmatprep.subr.mxu0 0.0
        %v359 = vand.u32 %v232, 4294901760
        %v360 = vsub.f32 %v232, %v359
        %v361 = vand.u32 %v360, 4294901760
        %v362 = vsub.f32 %v360, %v361
        %v363 = vand.u32 %v362, 4294901760
        %364 = vmatpush1.msra.mxu0 %v363
        %365 = vmatprep.subr.mxu0 0.0
        %v366 = vand.u32 %v231, 4294901760
        %v367 = vsub.f32 %v231, %v366
        %v368 = vand.u32 %v367, 4294901760
        %v369 = vsub.f32 %v367, %v368
        %v370 = vand.u32 %v369, 4294901760
        %371 = vmatpush1.msra.mxu0 %v370
        %372 = vmatprep.subr.mxu0 0.0
        %v373 = vand.u32 %v230, 4294901760
        %v374 = vsub.f32 %v230, %v373
        %v375 = vand.u32 %v374, 4294901760
        %v376 = vsub.f32 %v374, %v375
        %v377 = vand.u32 %v376, 4294901760
        %378 = vmatpush1.msra.mxu0 %v377
        %379 = vmatprep.subr.mxu0 0.0
        %v380 = vand.u32 %v229, 4294901760
        %v381 = vsub.f32 %v229, %v380
        %v382 = vand.u32 %v381, 4294901760
        %v383 = vsub.f32 %v381, %v382
        %v384 = vand.u32 %v383, 4294901760
        %385 = vmatpush1.msra.mxu0 %v384
        %386 = vmatprep.subr.mxu0 0.0
        %v387 = vand.u32 %v228, 4294901760
        %v388 = vsub.f32 %v228, %v387
        %v389 = vand.u32 %v388, 4294901760
        %v390 = vsub.f32 %v388, %v389
        %v391 = vand.u32 %v390, 4294901760
        %392 = vmatpush1.msra.mxu0 %v391
        %393 = vmatprep.subr.mxu0 0.0
        %v394 = vand.u32 %v227, 4294901760
        %v395 = vsub.f32 %v227, %v394
        %v396 = vand.u32 %v395, 4294901760
        %v397 = vsub.f32 %v395, %v396
        %v398 = vand.u32 %v397, 4294901760
        %399 = vmatpush1.msra.mxu0 %v398
        %400 = vmatprep.subr.mxu0 0.0
        %v401 = vand.u32 %v226, 4294901760
        %v402 = vsub.f32 %v226, %v401
        %v403 = vand.u32 %v402, 4294901760
        %v404 = vsub.f32 %v402, %v403
        %v405 = vand.u32 %v404, 4294901760
        %406 = vmatpush1.msra.mxu0 %v405
        %407 = vmatprep.subr.mxu0 0.0
        %v408 = vand.u32 %v225, 4294901760
        %v409 = vsub.f32 %v225, %v408
        %v410 = vand.u32 %v409, 4294901760
        %v411 = vsub.f32 %v409, %v410
        %v412 = vand.u32 %v411, 4294901760
        %413 = vmatpush1.msra.mxu0 %v412
        %414 = vmatprep.subr.mxu0 0.0
        %v415 = vand.u32 %v224, 4294901760
        %v416 = vsub.f32 %v224, %v415
        %v417 = vand.u32 %v416, 4294901760
        %v418 = vsub.f32 %v416, %v417
        %v419 = vand.u32 %v418, 4294901760
        %420 = vmatpush1.msra.mxu0 %v419
        %421 = vmatprep.subr.mxu0 0.0
        %v422 = vand.u32 %v223, 4294901760
        %v423 = vsub.f32 %v223, %v422
        %v424 = vand.u32 %v423, 4294901760
        %v425 = vsub.f32 %v423, %v424
        %v426 = vand.u32 %v425, 4294901760
        %427 = vmatpush1.msra.mxu0 %v426
        %428 = vmatprep.subr.mxu0 0.0
        %v429 = vand.u32 %v222, 4294901760
        %v430 = vsub.f32 %v222, %v429
        %v431 = vand.u32 %v430, 4294901760
        %v432 = vsub.f32 %v430, %v431
        %v433 = vand.u32 %v432, 4294901760
        %434 = vmatpush1.msra.mxu0 %v433
        %435 = vmatprep.subr.mxu0 0.0
        %v436 = vand.u32 %v221, 4294901760
        %v437 = vsub.f32 %v221, %v436
        %v438 = vand.u32 %v437, 4294901760
        %v439 = vsub.f32 %v437, %v438
        %v440 = vand.u32 %v439, 4294901760
        %441 = vmatpush1.msra.mxu0 %v440
        %442 = vmatprep.subr.mxu0 0.0
        %v443 = vand.u32 %v220, 4294901760
        %v444 = vsub.f32 %v220, %v443
        %v445 = vand.u32 %v444, 4294901760
        %v446 = vsub.f32 %v444, %v445
        %v447 = vand.u32 %v446, 4294901760
        %448 = vmatpush1.msra.mxu0 %v447
        %449 = vmatprep.subr.mxu0 0.0
        %450 = vmatpush2.msra.mxu0 0.0
        %451 = vmatprep.subr.mxu0 0.0
        %452 = vmatpush2.msra.mxu0 0.0
        %453 = vmatprep.subr.mxu0 0.0
        %454 = vmatpush2.msra.mxu0 0.0
        %455 = vmatprep.subr.mxu0 0.0
        %456 = vmatpush2.msra.mxu0 0.0
        %457 = vmatprep.subr.mxu0 0.0
        %458 = vmatpush2.msra.mxu0 0.0
        %459 = vmatprep.subr.mxu0 0.0
        %460 = vmatpush2.msra.mxu0 0.0
        %461 = vmatprep.subr.mxu0 0.0
        %462 = vmatpush2.msra.mxu0 0.0
        %463 = vmatprep.subr.mxu0 0.0
        %464 = vmatpush2.msra.mxu0 0.0
        %465 = vmatprep.subr.mxu0 0.0
        %466 = vmatpush2.msra.mxu0 0.0
        %467 = vmatprep.subr.mxu0 0.0
        %468 = vmatpush2.msra.mxu0 0.0
        %469 = vmatprep.subr.mxu0 0.0
        %470 = vmatpush2.msra.mxu0 0.0
        %471 = vmatprep.subr.mxu0 0.0
        %472 = vmatpush2.msra.mxu0 0.0
        %473 = vmatprep.subr.mxu0 0.0
        %474 = vmatpush2.msra.mxu0 0.0
        %475 = vmatprep.subr.mxu0 0.0
        %476 = vmatpush2.msra.mxu0 0.0
        %477 = vmatprep.subr.mxu0 0.0
        %478 = vmatpush2.msra.mxu0 0.0
        %479 = vmatprep.subr.mxu0 0.0
        %480 = vmatpush2.msra.mxu0 0.0
        %481 = vmatprep.mubr.f32.mxu0 0.0
        %v482 = vand.u32 %v218, 4294901760
        %483 = vmatmul.mubr.f32.gmra.mxu0 %v482
        %v484 = vpop.f32.mrf.mxu0
        %v485 = vadd.f32 %v324, %v484
        %v486 = vpop.f32.mrf.mxu0
        %487 = vmatprep.mubr.f32.mxu0 0.0
        %v488 = vand.u32 %v219, 4294901760
        %489 = vmatmul.mubr.f32.gmra.mxu0 %v488
        %v490 = vpop.f32.mrf.mxu0
        %v491 = vadd.f32 %v334, %v490
        %v492 = vpop.f32.mrf.mxu0
        %493 = vdwg.mxu0
        %494 = vmatprep.subr.mxu0 0.0
        %v495 = vand.u32 %v235, 4294901760
        %v496 = vsub.f32 %v235, %v495
        %497 = vmatpush1.msra.mxu0 %v496
        %498 = vmatprep.subr.mxu0 0.0
        %v499 = vand.u32 %v234, 4294901760
        %v500 = vsub.f32 %v234, %v499
        %501 = vmatpush1.msra.mxu0 %v500
        %502 = vmatprep.subr.mxu0 0.0
        %v503 = vand.u32 %v233, 4294901760
        %v504 = vsub.f32 %v233, %v503
        %505 = vmatpush1.msra.mxu0 %v504
        %506 = vmatprep.subr.mxu0 0.0
        %v507 = vand.u32 %v232, 4294901760
        %v508 = vsub.f32 %v232, %v507
        %509 = vmatpush1.msra.mxu0 %v508
        %510 = vmatprep.subr.mxu0 0.0
        %v511 = vand.u32 %v231, 4294901760
        %v512 = vsub.f32 %v231, %v511
        %513 = vmatpush1.msra.mxu0 %v512
        %514 = vmatprep.subr.mxu0 0.0
        %v515 = vand.u32 %v230, 4294901760
        %v516 = vsub.f32 %v230, %v515
        %517 = vmatpush1.msra.mxu0 %v516
        %518 = vmatprep.subr.mxu0 0.0
        %v519 = vand.u32 %v229, 4294901760
        %v520 = vsub.f32 %v229, %v519
        %521 = vmatpush1.msra.mxu0 %v520
        %522 = vmatprep.subr.mxu0 0.0
        %v523 = vand.u32 %v228, 4294901760
        %v524 = vsub.f32 %v228, %v523
        %525 = vmatpush1.msra.mxu0 %v524
        %526 = vmatprep.subr.mxu0 0.0
        %v527 = vand.u32 %v227, 4294901760
        %v528 = vsub.f32 %v227, %v527
        %529 = vmatpush1.msra.mxu0 %v528
        %530 = vmatprep.subr.mxu0 0.0
        %v531 = vand.u32 %v226, 4294901760
        %v532 = vsub.f32 %v226, %v531
        %533 = vmatpush1.msra.mxu0 %v532
        %534 = vmatprep.subr.mxu0 0.0
        %v535 = vand.u32 %v225, 4294901760
        %v536 = vsub.f32 %v225, %v535
        %537 = vmatpush1.msra.mxu0 %v536
        %538 = vmatprep.subr.mxu0 0.0
        %v539 = vand.u32 %v224, 4294901760
        %v540 = vsub.f32 %v224, %v539
        %541 = vmatpush1.msra.mxu0 %v540
        %542 = vmatprep.subr.mxu0 0.0
        %v543 = vand.u32 %v223, 4294901760
        %v544 = vsub.f32 %v223, %v543
        %545 = vmatpush1.msra.mxu0 %v544
        %546 = vmatprep.subr.mxu0 0.0
        %v547 = vand.u32 %v222, 4294901760
        %v548 = vsub.f32 %v222, %v547
        %549 = vmatpush1.msra.mxu0 %v548
        %550 = vmatprep.subr.mxu0 0.0
        %v551 = vand.u32 %v221, 4294901760
        %v552 = vsub.f32 %v221, %v551
        %553 = vmatpush1.msra.mxu0 %v552
        %554 = vmatprep.subr.mxu0 0.0
        %v555 = vand.u32 %v220, 4294901760
        %v556 = vsub.f32 %v220, %v555
        %557 = vmatpush1.msra.mxu0 %v556
        %558 = vmatprep.subr.mxu0 0.0
        %559 = vmatpush2.msra.mxu0 0.0
        %560 = vmatprep.subr.mxu0 0.0
        %561 = vmatpush2.msra.mxu0 0.0
        %562 = vmatprep.subr.mxu0 0.0
        %563 = vmatpush2.msra.mxu0 0.0
        %564 = vmatprep.subr.mxu0 0.0
        %565 = vmatpush2.msra.mxu0 0.0
        %566 = vmatprep.subr.mxu0 0.0
        %567 = vmatpush2.msra.mxu0 0.0
        %568 = vmatprep.subr.mxu0 0.0
        %569 = vmatpush2.msra.mxu0 0.0
        %570 = vmatprep.subr.mxu0 0.0
        %571 = vmatpush2.msra.mxu0 0.0
        %572 = vmatprep.subr.mxu0 0.0
        %573 = vmatpush2.msra.mxu0 0.0
        %574 = vmatprep.subr.mxu0 0.0
        %575 = vmatpush2.msra.mxu0 0.0
        %576 = vmatprep.subr.mxu0 0.0
        %577 = vmatpush2.msra.mxu0 0.0
        %578 = vmatprep.subr.mxu0 0.0
        %579 = vmatpush2.msra.mxu0 0.0
        %580 = vmatprep.subr.mxu0 0.0
        %581 = vmatpush2.msra.mxu0 0.0
        %582 = vmatprep.subr.mxu0 0.0
        %583 = vmatpush2.msra.mxu0 0.0
        %584 = vmatprep.subr.mxu0 0.0
        %585 = vmatpush2.msra.mxu0 0.0
        %586 = vmatprep.subr.mxu0 0.0
        %587 = vmatpush2.msra.mxu0 0.0
        %588 = vmatprep.subr.mxu0 0.0
        %589 = vmatpush2.msra.mxu0 0.0
        %590 = vmatprep.mubr.f32.mxu0 0.0
        %v591 = vand.u32 %v218, 4294901760
        %v592 = vsub.f32 %v218, %v591
        %593 = vmatmul.mubr.f32.gmra.mxu0 %v592
        %v594 = vpop.f32.mrf.mxu0
        %v595 = vadd.f32 %v485, %v594
        %v596 = vpop.f32.mrf.mxu0
        %597 = vmatprep.mubr.f32.mxu0 0.0
        %v598 = vand.u32 %v219, 4294901760
        %v599 = vsub.f32 %v219, %v598
        %600 = vmatmul.mubr.f32.gmra.mxu0 %v599
        %v601 = vpop.f32.mrf.mxu0
        %v602 = vadd.f32 %v491, %v601
        %v603 = vpop.f32.mrf.mxu0
        %604 = vdwg.mxu0
        %605 = vmatprep.subr.mxu0 0.0
        %v606 = vand.u32 %v235, 4294901760
        %607 = vmatpush1.msra.mxu0 %v606
        %608 = vmatprep.subr.mxu0 0.0
        %v609 = vand.u32 %v234, 4294901760
        %610 = vmatpush1.msra.mxu0 %v609
        %611 = vmatprep.subr.mxu0 0.0
        %v612 = vand.u32 %v233, 4294901760
        %613 = vmatpush1.msra.mxu0 %v612
        %614 = vmatprep.subr.mxu0 0.0
        %v615 = vand.u32 %v232, 4294901760
        %616 = vmatpush1.msra.mxu0 %v615
        %617 = vmatprep.subr.mxu0 0.0
        %v618 = vand.u32 %v231, 4294901760
        %619 = vmatpush1.msra.mxu0 %v618
        %620 = vmatprep.subr.mxu0 0.0
        %v621 = vand.u32 %v230, 4294901760
        %622 = vmatpush1.msra.mxu0 %v621
        %623 = vmatprep.subr.mxu0 0.0
        %v624 = vand.u32 %v229, 4294901760
        %625 = vmatpush1.msra.mxu0 %v624
        %626 = vmatprep.subr.mxu0 0.0
        %v627 = vand.u32 %v228, 4294901760
        %628 = vmatpush1.msra.mxu0 %v627
        %629 = vmatprep.subr.mxu0 0.0
        %v630 = vand.u32 %v227, 4294901760
        %631 = vmatpush1.msra.mxu0 %v630
        %632 = vmatprep.subr.mxu0 0.0
        %v633 = vand.u32 %v226, 4294901760
        %634 = vmatpush1.msra.mxu0 %v633
        %635 = vmatprep.subr.mxu0 0.0
        %v636 = vand.u32 %v225, 4294901760
        %637 = vmatpush1.msra.mxu0 %v636
        %638 = vmatprep.subr.mxu0 0.0
        %v639 = vand.u32 %v224, 4294901760
        %640 = vmatpush1.msra.mxu0 %v639
        %641 = vmatprep.subr.mxu0 0.0
        %v642 = vand.u32 %v223, 4294901760
        %643 = vmatpush1.msra.mxu0 %v642
        %644 = vmatprep.subr.mxu0 0.0
        %v645 = vand.u32 %v222, 4294901760
        %646 = vmatpush1.msra.mxu0 %v645
        %647 = vmatprep.subr.mxu0 0.0
        %v648 = vand.u32 %v221, 4294901760
        %649 = vmatpush1.msra.mxu0 %v648
        %650 = vmatprep.subr.mxu0 0.0
        %v651 = vand.u32 %v220, 4294901760
        %652 = vmatpush1.msra.mxu0 %v651
        %653 = vmatprep.subr.mxu0 0.0
        %654 = vmatpush2.msra.mxu0 0.0
        %655 = vmatprep.subr.mxu0 0.0
        %656 = vmatpush2.msra.mxu0 0.0
        %657 = vmatprep.subr.mxu0 0.0
        %658 = vmatpush2.msra.mxu0 0.0
        %659 = vmatprep.subr.mxu0 0.0
        %660 = vmatpush2.msra.mxu0 0.0
        %661 = vmatprep.subr.mxu0 0.0
        %662 = vmatpush2.msra.mxu0 0.0
        %663 = vmatprep.subr.mxu0 0.0
        %664 = vmatpush2.msra.mxu0 0.0
        %665 = vmatprep.subr.mxu0 0.0
        %666 = vmatpush2.msra.mxu0 0.0
        %667 = vmatprep.subr.mxu0 0.0
        %668 = vmatpush2.msra.mxu0 0.0
        %669 = vmatprep.subr.mxu0 0.0
        %670 = vmatpush2.msra.mxu0 0.0
        %671 = vmatprep.subr.mxu0 0.0
        %672 = vmatpush2.msra.mxu0 0.0
        %673 = vmatprep.subr.mxu0 0.0
        %674 = vmatpush2.msra.mxu0 0.0
        %675 = vmatprep.subr.mxu0 0.0
        %676 = vmatpush2.msra.mxu0 0.0
        %677 = vmatprep.subr.mxu0 0.0
        %678 = vmatpush2.msra.mxu0 0.0
        %679 = vmatprep.subr.mxu0 0.0
        %680 = vmatpush2.msra.mxu0 0.0
        %681 = vmatprep.subr.mxu0 0.0
        %682 = vmatpush2.msra.mxu0 0.0
        %683 = vmatprep.subr.mxu0 0.0
        %684 = vmatpush2.msra.mxu0 0.0
        %685 = vmatprep.mubr.f32.mxu0 0.0
        %v686 = vand.u32 %v218, 4294901760
        %v687 = vsub.f32 %v218, %v686
        %v688 = vand.u32 %v687, 4294901760
        %689 = vmatmul.mubr.f32.gmra.mxu0 %v688
        %v690 = vpop.f32.mrf.mxu0
        %v691 = vadd.f32 %v595, %v690
        %v692 = vpop.f32.mrf.mxu0
        %693 = vmatprep.mubr.f32.mxu0 0.0
        %v694 = vand.u32 %v219, 4294901760
        %v695 = vsub.f32 %v219, %v694
        %v696 = vand.u32 %v695, 4294901760
        %697 = vmatmul.mubr.f32.gmra.mxu0 %v696
        %v698 = vpop.f32.mrf.mxu0
        %v699 = vadd.f32 %v602, %v698
        %v700 = vpop.f32.mrf.mxu0
        %701 = vdwg.mxu0
        %702 = vmatprep.subr.mxu0 0.0
        %v703 = vand.u32 %v235, 4294901760
        %v704 = vsub.f32 %v235, %v703
        %v705 = vand.u32 %v704, 4294901760
        %706 = vmatpush1.msra.mxu0 %v705
        %707 = vmatprep.subr.mxu0 0.0
        %v708 = vand.u32 %v234, 4294901760
        %v709 = vsub.f32 %v234, %v708
        %v710 = vand.u32 %v709, 4294901760
        %711 = vmatpush1.msra.mxu0 %v710
        %712 = vmatprep.subr.mxu0 0.0
        %v713 = vand.u32 %v233, 4294901760
        %v714 = vsub.f32 %v233, %v713
        %v715 = vand.u32 %v714, 4294901760
        %716 = vmatpush1.msra.mxu0 %v715
        %717 = vmatprep.subr.mxu0 0.0
        %v718 = vand.u32 %v232, 4294901760
        %v719 = vsub.f32 %v232, %v718
        %v720 = vand.u32 %v719, 4294901760
        %721 = vmatpush1.msra.mxu0 %v720
        %722 = vmatprep.subr.mxu0 0.0
        %v723 = vand.u32 %v231, 4294901760
        %v724 = vsub.f32 %v231, %v723
        %v725 = vand.u32 %v724, 4294901760
        %726 = vmatpush1.msra.mxu0 %v725
        %727 = vmatprep.subr.mxu0 0.0
        %v728 = vand.u32 %v230, 4294901760
        %v729 = vsub.f32 %v230, %v728
        %v730 = vand.u32 %v729, 4294901760
        %731 = vmatpush1.msra.mxu0 %v730
        %732 = vmatprep.subr.mxu0 0.0
        %v733 = vand.u32 %v229, 4294901760
        %v734 = vsub.f32 %v229, %v733
        %v735 = vand.u32 %v734, 4294901760
        %736 = vmatpush1.msra.mxu0 %v735
        %737 = vmatprep.subr.mxu0 0.0
        %v738 = vand.u32 %v228, 4294901760
        %v739 = vsub.f32 %v228, %v738
        %v740 = vand.u32 %v739, 4294901760
        %741 = vmatpush1.msra.mxu0 %v740
        %742 = vmatprep.subr.mxu0 0.0
        %v743 = vand.u32 %v227, 4294901760
        %v744 = vsub.f32 %v227, %v743
        %v745 = vand.u32 %v744, 4294901760
        %746 = vmatpush1.msra.mxu0 %v745
        %747 = vmatprep.subr.mxu0 0.0
        %v748 = vand.u32 %v226, 4294901760
        %v749 = vsub.f32 %v226, %v748
        %v750 = vand.u32 %v749, 4294901760
        %751 = vmatpush1.msra.mxu0 %v750
        %752 = vmatprep.subr.mxu0 0.0
        %v753 = vand.u32 %v225, 4294901760
        %v754 = vsub.f32 %v225, %v753
        %v755 = vand.u32 %v754, 4294901760
        %756 = vmatpush1.msra.mxu0 %v755
        %757 = vmatprep.subr.mxu0 0.0
        %v758 = vand.u32 %v224, 4294901760
        %v759 = vsub.f32 %v224, %v758
        %v760 = vand.u32 %v759, 4294901760
        %761 = vmatpush1.msra.mxu0 %v760
        %762 = vmatprep.subr.mxu0 0.0
        %v763 = vand.u32 %v223, 4294901760
        %v764 = vsub.f32 %v223, %v763
        %v765 = vand.u32 %v764, 4294901760
        %766 = vmatpush1.msra.mxu0 %v765
        %767 = vmatprep.subr.mxu0 0.0
        %v768 = vand.u32 %v222, 4294901760
        %v769 = vsub.f32 %v222, %v768
        %v770 = vand.u32 %v769, 4294901760
        %771 = vmatpush1.msra.mxu0 %v770
        %772 = vmatprep.subr.mxu0 0.0
        %v773 = vand.u32 %v221, 4294901760
        %v774 = vsub.f32 %v221, %v773
        %v775 = vand.u32 %v774, 4294901760
        %776 = vmatpush1.msra.mxu0 %v775
        %777 = vmatprep.subr.mxu0 0.0
        %v778 = vand.u32 %v220, 4294901760
        %v779 = vsub.f32 %v220, %v778
        %v780 = vand.u32 %v779, 4294901760
        %781 = vmatpush1.msra.mxu0 %v780
        %782 = vmatprep.subr.mxu0 0.0
        %783 = vmatpush2.msra.mxu0 0.0
        %784 = vmatprep.subr.mxu0 0.0
        %785 = vmatpush2.msra.mxu0 0.0
        %786 = vmatprep.subr.mxu0 0.0
        %787 = vmatpush2.msra.mxu0 0.0
        %788 = vmatprep.subr.mxu0 0.0
        %789 = vmatpush2.msra.mxu0 0.0
        %790 = vmatprep.subr.mxu0 0.0
        %791 = vmatpush2.msra.mxu0 0.0
        %792 = vmatprep.subr.mxu0 0.0
        %793 = vmatpush2.msra.mxu0 0.0
        %794 = vmatprep.subr.mxu0 0.0
        %795 = vmatpush2.msra.mxu0 0.0
        %796 = vmatprep.subr.mxu0 0.0
        %797 = vmatpush2.msra.mxu0 0.0
        %798 = vmatprep.subr.mxu0 0.0
        %799 = vmatpush2.msra.mxu0 0.0
        %800 = vmatprep.subr.mxu0 0.0
        %801 = vmatpush2.msra.mxu0 0.0
        %802 = vmatprep.subr.mxu0 0.0
        %803 = vmatpush2.msra.mxu0 0.0
        %804 = vmatprep.subr.mxu0 0.0
        %805 = vmatpush2.msra.mxu0 0.0
        %806 = vmatprep.subr.mxu0 0.0
        %807 = vmatpush2.msra.mxu0 0.0
        %808 = vmatprep.subr.mxu0 0.0
        %809 = vmatpush2.msra.mxu0 0.0
        %810 = vmatprep.subr.mxu0 0.0
        %811 = vmatpush2.msra.mxu0 0.0
        %812 = vmatprep.subr.mxu0 0.0
        %813 = vmatpush2.msra.mxu0 0.0
        %814 = vmatprep.mubr.f32.mxu0 0.0
        %v815 = vand.u32 %v218, 4294901760
        %816 = vmatmul.mubr.f32.gmra.mxu0 %v815
        %v817 = vpop.f32.mrf.mxu0
        %v818 = vadd.f32 %v691, %v817
        %v819 = vpop.f32.mrf.mxu0
        %820 = vmatprep.mubr.f32.mxu0 0.0
        %v821 = vand.u32 %v219, 4294901760
        %822 = vmatmul.mubr.f32.gmra.mxu0 %v821
        %v823 = vpop.f32.mrf.mxu0
        %v824 = vadd.f32 %v699, %v823
        %v825 = vpop.f32.mrf.mxu0
        %826 = vdwg.mxu0
        %827 = vmatprep.subr.mxu0 0.0
        %v828 = vand.u32 %v235, 4294901760
        %829 = vmatpush1.msra.mxu0 %v828
        %830 = vmatprep.subr.mxu0 0.0
        %v831 = vand.u32 %v234, 4294901760
        %832 = vmatpush1.msra.mxu0 %v831
        %833 = vmatprep.subr.mxu0 0.0
        %v834 = vand.u32 %v233, 4294901760
        %835 = vmatpush1.msra.mxu0 %v834
        %836 = vmatprep.subr.mxu0 0.0
        %v837 = vand.u32 %v232, 4294901760
        %838 = vmatpush1.msra.mxu0 %v837
        %839 = vmatprep.subr.mxu0 0.0
        %v840 = vand.u32 %v231, 4294901760
        %841 = vmatpush1.msra.mxu0 %v840
        %842 = vmatprep.subr.mxu0 0.0
        %v843 = vand.u32 %v230, 4294901760
        %844 = vmatpush1.msra.mxu0 %v843
        %845 = vmatprep.subr.mxu0 0.0
        %v846 = vand.u32 %v229, 4294901760
        %847 = vmatpush1.msra.mxu0 %v846
        %848 = vmatprep.subr.mxu0 0.0
        %v849 = vand.u32 %v228, 4294901760
        %850 = vmatpush1.msra.mxu0 %v849
        %851 = vmatprep.subr.mxu0 0.0
        %v852 = vand.u32 %v227, 4294901760
        %853 = vmatpush1.msra.mxu0 %v852
        %854 = vmatprep.subr.mxu0 0.0
        %v855 = vand.u32 %v226, 4294901760
        %856 = vmatpush1.msra.mxu0 %v855
        %857 = vmatprep.subr.mxu0 0.0
        %v858 = vand.u32 %v225, 4294901760
        %859 = vmatpush1.msra.mxu0 %v858
        %860 = vmatprep.subr.mxu0 0.0
        %v861 = vand.u32 %v224, 4294901760
        %862 = vmatpush1.msra.mxu0 %v861
        %863 = vmatprep.subr.mxu0 0.0
        %v864 = vand.u32 %v223, 4294901760
        %865 = vmatpush1.msra.mxu0 %v864
        %866 = vmatprep.subr.mxu0 0.0
        %v867 = vand.u32 %v222, 4294901760
        %868 = vmatpush1.msra.mxu0 %v867
        %869 = vmatprep.subr.mxu0 0.0
        %v870 = vand.u32 %v221, 4294901760
        %871 = vmatpush1.msra.mxu0 %v870
        %872 = vmatprep.subr.mxu0 0.0
        %v873 = vand.u32 %v220, 4294901760
        %874 = vmatpush1.msra.mxu0 %v873
        %875 = vmatprep.subr.mxu0 0.0
        %876 = vmatpush2.msra.mxu0 0.0
        %877 = vmatprep.subr.mxu0 0.0
        %878 = vmatpush2.msra.mxu0 0.0
        %879 = vmatprep.subr.mxu0 0.0
        %880 = vmatpush2.msra.mxu0 0.0
        %881 = vmatprep.subr.mxu0 0.0
        %882 = vmatpush2.msra.mxu0 0.0
        %883 = vmatprep.subr.mxu0 0.0
        %884 = vmatpush2.msra.mxu0 0.0
        %885 = vmatprep.subr.mxu0 0.0
        %886 = vmatpush2.msra.mxu0 0.0
        %887 = vmatprep.subr.mxu0 0.0
        %888 = vmatpush2.msra.mxu0 0.0
        %889 = vmatprep.subr.mxu0 0.0
        %890 = vmatpush2.msra.mxu0 0.0
        %891 = vmatprep.subr.mxu0 0.0
        %892 = vmatpush2.msra.mxu0 0.0
        %893 = vmatprep.subr.mxu0 0.0
        %894 = vmatpush2.msra.mxu0 0.0
        %895 = vmatprep.subr.mxu0 0.0
        %896 = vmatpush2.msra.mxu0 0.0
        %897 = vmatprep.subr.mxu0 0.0
        %898 = vmatpush2.msra.mxu0 0.0
        %899 = vmatprep.subr.mxu0 0.0
        %900 = vmatpush2.msra.mxu0 0.0
        %901 = vmatprep.subr.mxu0 0.0
        %902 = vmatpush2.msra.mxu0 0.0
        %903 = vmatprep.subr.mxu0 0.0
        %904 = vmatpush2.msra.mxu0 0.0
        %905 = vmatprep.subr.mxu0 0.0
        %906 = vmatpush2.msra.mxu0 0.0
        %907 = vmatprep.mubr.f32.mxu0 0.0
        %v908 = vand.u32 %v218, 4294901760
        %909 = vmatmul.mubr.f32.gmra.mxu0 %v908
        %v910 = vpop.f32.mrf.mxu0
        %v911 = vadd.f32 %v818, %v910
        %v912 = vpop.f32.mrf.mxu0
        %913 = vmatprep.mubr.f32.mxu0 0.0
        %v914 = vand.u32 %v219, 4294901760
        %915 = vmatmul.mubr.f32.gmra.mxu0 %v914
        %v916 = vpop.f32.mrf.mxu0
        %v917 = vadd.f32 %v824, %v916
        %v918 = vpop.f32.mrf.mxu0
        %919 = vdwg.mxu0
        %v920 = vld [vmem:[#allocation7] sm:$0xff]
        %v921 = vld [vmem:[#allocation7 + $0x8] sm:$0xff]
        %v922 = vadd.f32 %v911, %v920
        %v923 = vadd.f32 %v917, %v921
        %924 = vst [vmem:[%s217] sm:$0xff] %v922
        %925 = vst [vmem:[%s217 + $0x8] sm:$0xff] %v923
        %s926 = sand.u32 %s97, 1
        %s927 = scalar_lea.sflag [#allocation4], %s926
        %s928 = sand.u32 %s97, 1
        %s929 = smul.addr %s928, 16
        %s930 = scalar_lea.vmem [#allocation8], %s929
        // Predicated region
        $region45: #{tpu_custom_call.1} parent=31 // pred_check
          %p931 = pneg %p107
        $region46: #{tpu_custom_call.1} parent=31 // pred_check_branch
          %933 = sbr.rel (%p931) target = $region48
        $region47: #{tpu_custom_call.1} parent=31 // pred_region
          %s935 = ssub.s32 256, 256
          %936 = vsyncadd %s927, %s935
          %s937 = smul.addr %s21, 2
          %s938 = smul.addr %s937, 128
          %s939 = scalar_lea.hbm %s3, %s938
          %s940 = sshll.u32 %s930, 4
          %s941 = int_to_ptr.vmem [resolvable:$true] %s940
          %946 = dma.vmem_to_hbm [thread:$0]  %s941, 256, %s939, %s927, 128, 128, 8
        $region48: #{tpu_custom_call.1} parent=31 // pred_fallthru
          _
      $region32: #{tpu_custom_call.1} parent=5 // pred_fallthru
        _
      %p947 = scmp.le.s32.totalorder 2, %s16
      // Predicated region
      $region49: #{tpu_custom_call.1} parent=5 // pred_check
        %p948 = pneg %p947
      $region50: #{tpu_custom_call.1} parent=5 // pred_check_branch
        %950 = sbr.rel (%p948) target = $region52
      $region51: #{tpu_custom_call.1} parent=5 // pred_region
        %s951 = ssub.s32 %s16, 2
        // Predicated region
        $region53: #{tpu_custom_call.1} parent=51 // pred_check
          %p952 = pneg %p113
        $region54: #{tpu_custom_call.1} parent=51 // pred_check_branch
          %954 = sbr.rel (%p952) target = $region56
        $region55: #{tpu_custom_call.1} parent=51 // pred_region
          %s955 = sand.u32 %s98, 1
          %s956 = scalar_lea.sflag [#allocation4], %s955
          %s957 = sand.u32 %s98, 1
          %s958 = smul.addr %s957, 16
          %s959 = scalar_lea.vmem [#allocation8], %s958
          %960 = dma.done %s956, 256
        $region56: #{tpu_custom_call.1} parent=51 // pred_fallthru
          _
      $region52: #{tpu_custom_call.1} parent=5 // pred_fallthru
        _
    $region6: #{tpu_custom_call.1} parent=1 // loop_footer
      %s20 = sadd.s32 1, %s16
    $region7: #{tpu_custom_call.1} parent=1 // loop_footer_branch
      %15 = sbr.rel target = $region3
    $region8: #{tpu_custom_call.1} parent=1 // loop_exit
      _
    %961 = vsyncpa [#allocation3], 1
    %s962 = scalar_lea.sflag [#allocation3], 1
    %963 = vsyncpa %s962, 1
    %964 = vsyncpa [#allocation6], 1
    %965 = vsyncpa [#allocation4], 1
    %s966 = scalar_lea.sflag [#allocation4], 1
    %967 = vsyncpa %s966, 1

</llo_original>
